<compile_context>
chip_gen: v5e
topology: v5e:2x2
jax: 0.10.0
libtpu: 0.0.40
codegen_flags: <defaults>
</compile_context>

<pallas_src>
import jax
import jax.numpy as jnp
from jax.experimental import pallas as pl
from jax.experimental.pallas import tpu as pltpu

BIG = 1e30  # same sentinel as the PyTorch reference


def _round_up(x, m):
    return ((x + m - 1) // m) * m


def _balanced_loss_kernel(logits_ref, labels_ref, loss_ref):
    """Per-row multilabel CCE for one (tile_rows, C) block."""
    y_pred = logits_ref[...].astype(jnp.float32)
    # Hard {0,1} labels assumed (matches the module's usage); selects replace
    # the arithmetic "- y*1e30" masking of the torch reference (fewer VALU ops,
    # identical result for hard labels).
    is_pos = labels_ref[...].astype(jnp.float32) > 0.5

    s = jnp.where(is_pos, -y_pred, y_pred)          # (1 - 2*y_true) * y_pred
    neg_masked = jnp.where(is_pos, -BIG, y_pred)    # y_pred - y_true*1e30
    pos_masked = jnp.where(is_pos, s, -BIG)         # s - (1-y_true)*1e30

    # Row maxes of each group, folded with the implicit appended-zero column.
    m_neg = jnp.maximum(jnp.max(neg_masked, axis=-1, keepdims=True), 0.0)
    m_pos = jnp.maximum(jnp.max(pos_masked, axis=-1, keepdims=True), 0.0)

    # Single exp per element: shift each element by the max of its own group.
    m_sel = jnp.where(is_pos, m_pos, m_neg)
    e = jnp.exp(s - m_sel)                          # EUP, once per element
    e_pos = jnp.where(is_pos, e, 0.0)               # exact 0 for negatives
    sum_all = jnp.sum(e, axis=-1, keepdims=True)
    sum_pos = jnp.sum(e_pos, axis=-1, keepdims=True)
    sum_neg = jnp.maximum(sum_all - sum_pos, 0.0)   # guard tiny cancellation

    # neg_loss + pos_loss with a single log; exp(-m) accounts for the appended
    # zeros column of the reference.
    loss_ref[...] = (m_neg + m_pos
                     + jnp.log((sum_neg + jnp.exp(-m_neg))
                               * (sum_pos + jnp.exp(-m_pos))))


def balanced_loss(logits, labels, *, tile_rows=None):
    """Mean multilabel categorical crossentropy (balanced_loss.forward)."""
    assert logits.shape == labels.shape and logits.ndim == 2
    n, c = logits.shape

    # Stream labels as bf16 (exact for hard 0/1 labels) to cut their HBM bytes
    # in half; the kernel casts back to f32 on the VPU.
    if labels.dtype == jnp.float32 or labels.dtype == jnp.float64:
        labels = labels.astype(jnp.bfloat16)

    # --- per-generation VMEM budget -----------------------------------------
    try:
        phys_vmem = int(pltpu.get_tpu_info().vmem_capacity_bytes)
    except Exception:
        phys_vmem = 64 * 1024 * 1024
    # v5e/v6e (128 MiB phys) -> 64 MiB scoped; v7x (64 MiB per TC) -> 32 MiB.
    vmem_limit = int(min(phys_vmem // 2, 64 * 1024 * 1024))
    block_budget = int(0.6 * vmem_limit)

    # --- real per-row VMEM footprint -----------------------------------------
    # lane-padded inputs x 2 pipeline buffers + ~4 live f32 working copies.
    c_pad = _round_up(c, 128)
    per_row_bytes = c_pad * (
        2 * (logits.dtype.itemsize + labels.dtype.itemsize) + 16)

    n_pad8 = _round_up(n, 8)
    if tile_rows is None:
        rows_budget = max(8, block_budget // max(per_row_bytes, 1))
        # >=4 grid steps when N allows -> megacore sharding on v7x.
        rows_mega = _round_up(max(1, pl.cdiv(n, 4)), 32)
        tile_rows = min(rows_budget, 2048, rows_mega)
        if tile_rows >= 32:
            tile_rows = (tile_rows // 32) * 32      # packed-dtype sublane tiling
        else:
            tile_rows = max(8, (tile_rows // 8) * 8)
        # TODO(synk): for enormous C (8 rows x c_pad > VMEM) a C-tiled two-pass
        # reduction would be needed; not implemented here.
    tile_rows = min(tile_rows, n_pad8)
    if tile_rows != n:
        tile_rows = max(8, (tile_rows // 8) * 8)    # keep (8,.) sublane tiling

    grid = (pl.cdiv(n, tile_rows),)

    per_row = pl.pallas_call(
        _balanced_loss_kernel,
        out_shape=jax.ShapeDtypeStruct((n, 1), jnp.float32),
        grid_spec=pltpu.PrefetchScalarGridSpec(
            num_scalar_prefetch=0,
            grid=grid,
            in_specs=[
                pl.BlockSpec((tile_rows, c), lambda i: (i, 0)),
                pl.BlockSpec((tile_rows, c), lambda i: (i, 0)),
            ],
            out_specs=pl.BlockSpec((tile_rows, 1), lambda i: (i, 0)),
        ),
        compiler_params=pltpu.CompilerParams(
            # every grid step owns a distinct output block -> fully parallel
            # (lets the row grid shard across v7x's 2 TensorCores)
            dimension_semantics=("parallel",),
            vmem_limit_bytes=vmem_limit,
        ),
    )(logits, labels)

    # Tiny final reduction (N floats) stays in plain JAX.
    return jnp.mean(per_row[:, 0])


def _reference_loss(logits, labels):
    """Plain-JAX reference mirroring the PyTorch code (sanity check)."""
    y_true, y_pred = labels.astype(jnp.float32), logits.astype(jnp.float32)
    y_pred = (1 - 2 * y_true) * y_pred
    y_pred_neg = y_pred - y_true * BIG
    y_pred_pos = y_pred - (1 - y_true) * BIG
    zeros = jnp.zeros_like(y_pred[..., :1])
    y_pred_neg = jnp.concatenate([y_pred_neg, zeros], axis=-1)
    y_pred_pos = jnp.concatenate([y_pred_pos, zeros], axis=-1)
    neg_loss = jax.scipy.special.logsumexp(y_pred_neg, axis=-1)
    pos_loss = jax.scipy.special.logsumexp(y_pred_pos, axis=-1)
    return jnp.mean(neg_loss + pos_loss)


if __name__ == "__main__":
    key = jax.random.PRNGKey(0)

    # Test 1: small shapes consistent with the module (16 examples, 24 labels).
    k1, k2, k3, k4 = jax.random.split(key, 4)
    N, C = 16, 24
    logits = jax.random.normal(k1, (N, C), dtype=jnp.float32) * 2.0
    labels = (jax.random.uniform(k2, (N, C)) > 0.7).astype(jnp.float32)
    loss = jax.block_until_ready(balanced_loss(logits, labels))
    ref = _reference_loss(logits, labels)
    assert jnp.allclose(loss, ref, rtol=1e-5, atol=1e-5), (loss, ref)

    # Test 2: ragged row grid (N % tile_rows != 0) + C not a multiple of 128,
    # to confirm pad rows / pad lanes never leak into valid outputs.
    N2, C2 = 100, 24
    logits2 = jax.random.normal(k3, (N2, C2), dtype=jnp.float32) * 2.0
    labels2 = (jax.random.uniform(k4, (N2, C2)) > 0.7).astype(jnp.float32)
    loss2 = jax.block_until_ready(balanced_loss(logits2, labels2, tile_rows=32))
    ref2 = _reference_loss(logits2, labels2)
    assert jnp.allclose(loss2, ref2, rtol=1e-5, atol=1e-5), (loss2, ref2)

    print("KERNEL_OK")
</pallas_src>

<mosaic_0001>
module attributes {stable_mosaic.version = 11 : i64} {
  func.func @_balanced_loss_kernel(%arg0: i32, %arg1: memref<16x24xf32, #tpu.memory_space<vmem>>, %arg2: memref<16x24xbf16, #tpu.memory_space<vmem>>, %arg3: memref<16x1xf32, #tpu.memory_space<vmem>>) attributes {dimension_semantics = [#tpu.dimension_semantics<parallel>], iteration_bounds = array<i64: 1>, scalar_prefetch = 0 : i64, scratch_operands = 0 : i64, tpu.core_type = #tpu.core_type<tc>, window_params = [{transform_indices = @transform_0, window_bounds = array<i64: 16, 24>}, {transform_indices = @transform_1, window_bounds = array<i64: 16, 24>}, {transform_indices = @transform_2, window_bounds = array<i64: 16, 1>}]} {
    %c0 = arith.constant 0 : index
    %c0_0 = arith.constant 0 : index
    %0 = vector.load %arg1[%c0, %c0_0] : memref<16x24xf32, #tpu.memory_space<vmem>>, vector<16x24xf32>
    %c0_1 = arith.constant 0 : index
    %c0_2 = arith.constant 0 : index
    %1 = vector.load %arg2[%c0_1, %c0_2] : memref<16x24xbf16, #tpu.memory_space<vmem>>, vector<16x24xbf16>
    %2 = arith.extf %1 : vector<16x24xbf16> to vector<16x24xf32>
    %cst = arith.constant 5.000000e-01 : f32
    %3 = vector.broadcast %cst : f32 to vector<16x24xf32>
    %4 = arith.cmpf ogt, %2, %3 : vector<16x24xf32>
    %cst_3 = arith.constant 0.000000e+00 : f32
    %5 = vector.broadcast %cst_3 : f32 to vector<16x24xf32>
    %6 = arith.subf %5, %0 : vector<16x24xf32>
    %7 = arith.select %4, %6, %0 : vector<16x24xi1>, vector<16x24xf32>
    %cst_4 = arith.constant -1.000000e+30 : f32
    %8 = vector.broadcast %cst_4 : f32 to vector<16x24xf32>
    %9 = arith.select %4, %8, %0 : vector<16x24xi1>, vector<16x24xf32>
    %cst_5 = arith.constant -1.000000e+30 : f32
    %10 = vector.broadcast %cst_5 : f32 to vector<16x24xf32>
    %11 = arith.select %4, %7, %10 : vector<16x24xi1>, vector<16x24xf32>
    %cst_6 = arith.constant dense<0xFF800000> : vector<16xf32>
    %12 = vector.multi_reduction <maximumf>, %9, %cst_6 [1] : vector<16x24xf32> to vector<16xf32>
    %13 = vector.shape_cast %12 : vector<16xf32> to vector<16x1xf32>
    %cst_7 = arith.constant 0.000000e+00 : f32
    %14 = vector.broadcast %cst_7 : f32 to vector<16x1xf32>
    %15 = arith.maximumf %13, %14 : vector<16x1xf32>
    %cst_8 = arith.constant dense<0xFF800000> : vector<16xf32>
    %16 = vector.multi_reduction <maximumf>, %11, %cst_8 [1] : vector<16x24xf32> to vector<16xf32>
    %17 = vector.shape_cast %16 : vector<16xf32> to vector<16x1xf32>
    %cst_9 = arith.constant 0.000000e+00 : f32
    %18 = vector.broadcast %cst_9 : f32 to vector<16x1xf32>
    %19 = arith.maximumf %17, %18 : vector<16x1xf32>
    %20 = vector.shape_cast %19 : vector<16x1xf32> to vector<16x1xf32>
    %21 = vector.broadcast %20 : vector<16x1xf32> to vector<16x24xf32>
    %22 = vector.shape_cast %15 : vector<16x1xf32> to vector<16x1xf32>
    %23 = vector.broadcast %22 : vector<16x1xf32> to vector<16x24xf32>
    %24 = arith.select %4, %21, %23 : vector<16x24xi1>, vector<16x24xf32>
    %25 = arith.subf %7, %24 : vector<16x24xf32>
    %26 = math.exp %25 : vector<16x24xf32>
    %cst_10 = arith.constant 0.000000e+00 : f32
    %27 = vector.broadcast %cst_10 : f32 to vector<16x24xf32>
    %28 = arith.select %4, %26, %27 : vector<16x24xi1>, vector<16x24xf32>
    %cst_11 = arith.constant dense<0.000000e+00> : vector<16xf32>
    %29 = vector.multi_reduction <add>, %26, %cst_11 [1] : vector<16x24xf32> to vector<16xf32>
    %30 = vector.shape_cast %29 : vector<16xf32> to vector<16x1xf32>
    %cst_12 = arith.constant dense<0.000000e+00> : vector<16xf32>
    %31 = vector.multi_reduction <add>, %28, %cst_12 [1] : vector<16x24xf32> to vector<16xf32>
    %32 = vector.shape_cast %31 : vector<16xf32> to vector<16x1xf32>
    %33 = arith.subf %30, %32 : vector<16x1xf32>
    %cst_13 = arith.constant 0.000000e+00 : f32
    %34 = vector.broadcast %cst_13 : f32 to vector<16x1xf32>
    %35 = arith.maximumf %33, %34 : vector<16x1xf32>
    %36 = arith.addf %15, %19 : vector<16x1xf32>
    %cst_14 = arith.constant 0.000000e+00 : f32
    %37 = vector.broadcast %cst_14 : f32 to vector<16x1xf32>
    %38 = arith.subf %37, %15 : vector<16x1xf32>
    %39 = math.exp %38 : vector<16x1xf32>
    %40 = arith.addf %35, %39 : vector<16x1xf32>
    %cst_15 = arith.constant 0.000000e+00 : f32
    %41 = vector.broadcast %cst_15 : f32 to vector<16x1xf32>
    %42 = arith.subf %41, %19 : vector<16x1xf32>
    %43 = math.exp %42 : vector<16x1xf32>
    %44 = arith.addf %32, %43 : vector<16x1xf32>
    %45 = arith.mulf %40, %44 : vector<16x1xf32>
    %46 = math.log %45 : vector<16x1xf32>
    %47 = arith.addf %36, %46 : vector<16x1xf32>
    %c0_16 = arith.constant 0 : index
    %c0_17 = arith.constant 0 : index
    %48 = vector.load %arg3[%c0_16, %c0_17] : memref<16x1xf32, #tpu.memory_space<vmem>>, vector<16x1xf32>
    tpu.vector_store %arg3[%c0_16, %c0_17], %47 {strides = array<i32>} : memref<16x1xf32, #tpu.memory_space<vmem>>, vector<16x1xf32>,
    return
  }
  func.func @transform_0(%arg0: i32) -> (i32, i32) {
    %c0_i32 = arith.constant 0 : i32
    %c0_i32_0 = arith.constant 0 : i32
    return %arg0, %c0_i32 : i32, i32
  }
  func.func @transform_1(%arg0: i32) -> (i32, i32) {
    %c0_i32 = arith.constant 0 : i32
    %c0_i32_0 = arith.constant 0 : i32
    return %arg0, %c0_i32 : i32, i32
  }
  func.func @transform_2(%arg0: i32) -> (i32, i32) {
    %c0_i32 = arith.constant 0 : i32
    %c0_i32_0 = arith.constant 0 : i32
    return %arg0, %c0_i32 : i32, i32
  }
}

</mosaic_0001>

<llo_original>
// kernel: tpu_custom_call.1
$region0: #{tpu_custom_call.1}
  #allocation0 [shape = 'u32[]', space=smem, size = 0x4, offset = 0x4, fixed_abs, tag = 'smem constant byte address 0x4 - core index']
  #allocation1 [shape = 'u32[72,128]{1,0:T(1,128)}', space=vmem, size = 0x9000, scoped, tag = 'internal scratch']
  %s0 = inlined_call_operand.hbm [shape: f32[16,24], index: 0, kind: input, shape index: {}]
  %s1 = inlined_call_operand.hbm [shape: bf16[16,24], index: 1, kind: input, shape index: {}]
  %s2 = inlined_call_operand.vmem [shape: f32[16,1], index: 2, kind: output, shape index: {}]
  %s3 = sld [smem:[#allocation0]]
  $region26: #{tpu_custom_call.1} parent=0
    _
  %s5 = ssub.s32 1, %s3
  %s6 = scalar_select 0, %s5, %s3
  $region1: #{tpu_custom_call.1} parent=0
    #allocation2 [shape = 'u8[8192]{0}', space=vmem, size = 0x2000, scoped, tag = 'input window, operand 0, single buffered']
    #allocation3 [shape = 's32[1]{0}', space=sflag, size = 0x4, scoped, tag = 'scoped memory for tpu_custom_call.1']
    #allocation4 [shape = 'u8[4096]{0}', space=vmem, size = 0x1000, scoped, tag = 'input window, operand 1, single buffered']
    #allocation5 [shape = 's32[1]{0}', space=sflag, size = 0x4, scoped, tag = 'scoped memory for tpu_custom_call.1']
    %7 = vsyncpa [#allocation3], 0
    %8 = vsyncpa [#allocation5], 0
    // Predicated region
    $region2: #{tpu_custom_call.1} parent=1 // pred_check
      _
    $region3: #{tpu_custom_call.1} parent=1 // pred_check_branch
      %10 = sbr.rel (0) target = $region5
    $region4: #{tpu_custom_call.1} parent=1 // pred_region
      %12 = vsyncadd [#allocation3], 0
      %s13 = sshll.u32 %s0, 4
      %s14 = int_to_ptr.hbm [resolvable:$true] %s13
      %s15 = sshll.u32 [#allocation2], 4
      %s16 = int_to_ptr.vmem [resolvable:$true] %s15
      %21 = dma.hbm_to_vmem [thread:$0]  %s14, 256, %s16, [#allocation3], 128, 128, 8
    $region5: #{tpu_custom_call.1} parent=1 // pred_fallthru
      _
    // Predicated region
    $region6: #{tpu_custom_call.1} parent=1 // pred_check
      _
    $region7: #{tpu_custom_call.1} parent=1 // pred_check_branch
      %23 = sbr.rel (0) target = $region9
    $region8: #{tpu_custom_call.1} parent=1 // pred_region
      %25 = vsyncadd [#allocation5], 0
      %s26 = sshll.u32 %s1, 4
      %s27 = int_to_ptr.hbm [resolvable:$true] %s26
      %s28 = sshll.u32 [#allocation4], 4
      %s29 = int_to_ptr.vmem [resolvable:$true] %s28
      %34 = dma.hbm_to_vmem [thread:$0]  %s27, 128, %s29, [#allocation5], 64, 64, 4
    $region9: #{tpu_custom_call.1} parent=1 // pred_fallthru
      _
    // Predicated region
    $region10: #{tpu_custom_call.1} parent=1 // pred_check
      _
    $region11: #{tpu_custom_call.1} parent=1 // pred_check_branch
      %36 = sbr.rel (0) target = $region13
    $region12: #{tpu_custom_call.1} parent=1 // pred_region
      %38 = dma.done [#allocation3], 256
    $region13: #{tpu_custom_call.1} parent=1 // pred_fallthru
      _
    // Predicated region
    $region14: #{tpu_custom_call.1} parent=1 // pred_check
      _
    $region15: #{tpu_custom_call.1} parent=1 // pred_check_branch
      %40 = sbr.rel (0) target = $region17
    $region16: #{tpu_custom_call.1} parent=1 // pred_region
      %42 = dma.done [#allocation5], 128
    $region17: #{tpu_custom_call.1} parent=1 // pred_fallthru
      _
    %v43 = vld [vmem:[#allocation2] sm:$0xff]
    %v44 = vld [vmem:[#allocation2 + $0x8] sm:$0xff]
    %v45 = vld [vmem:[#allocation4] sm:$0xf]
    %v46 = vld [vmem:[#allocation4 + $0x4] sm:$0xf]
    %v47 = vunpack.c.l.bf16 %v45
    %v48 = vunpack.c.l.bf16 %v46
    %vm49 = vcmp.gt.f32.partialorder %v47, 0.5
    %vm50 = vcmp.gt.f32.partialorder %v48, 0.5
    %v51 = vsub.f32 0.0, %v43
    %v52 = vsub.f32 0.0, %v44
    %v53 = vsel %vm49, %v51, %v43
    %v54 = vsel %vm50, %v52, %v44
    %v55 = vsel %vm49, -1e+30, %v43
    %v56 = vsel %vm50, -1e+30, %v44
    %v57 = vsel %vm49, %v51, -1e+30
    %v58 = vsel %vm50, %v52, -1e+30
    %vm59 = vcmask 195584
    %v60 = vsel %vm59, %v55, -inf
    %61 = vmax.xlane.f32.xlu0 %v60
    %v62 = vpop.xlane.xlu0 %61
    %v63 = vsel %vm59, %v56, -inf
    %64 = vmax.xlane.f32.xlu0 %v63
    %v65 = vpop.xlane.xlu0 %64
    %v66 = vmax.f32 %v62, 0.0
    %v67 = vmax.f32 %v65, 0.0
    %v68 = vsel %vm59, %v57, -inf
    %69 = vmax.xlane.f32.xlu0 %v68
    %v70 = vpop.xlane.xlu0 %69
    %v71 = vsel %vm59, %v58, -inf
    %72 = vmax.xlane.f32.xlu0 %v71
    %v73 = vpop.xlane.xlu0 %72
    %v74 = vmax.f32 %v70, 0.0
    %v75 = vmax.f32 %v73, 0.0
    %v76 = vsel %vm49, %v74, %v66
    %v77 = vsel %vm50, %v75, %v67
    %v78 = vsub.f32 %v53, %v76
    %v79 = vsub.f32 %v54, %v77
    %v80 = vmul.f32 %v78, 1.442695
    %v81 = vpow.pop %v80
    %v82 = vmul.f32 %v79, 1.442695
    %v83 = vpow.pop %v82
    %v84 = vsel %vm49, %v81, 0.0
    %v85 = vsel %vm50, %v83, 0.0
    %v86 = vsel %vm59, %v81, 0.0
    %87 = vadd.xlane.f32.xlu0 %v86
    %v88 = vpop.xlane.xlu0 %87
    %v89 = vsel %vm59, %v83, 0.0
    %90 = vadd.xlane.f32.xlu0 %v89
    %v91 = vpop.xlane.xlu0 %90
    %v92 = vsel %vm59, %v84, 0.0
    %93 = vadd.xlane.f32.xlu0 %v92
    %v94 = vpop.xlane.xlu0 %93
    %v95 = vsel %vm59, %v85, 0.0
    %96 = vadd.xlane.f32.xlu0 %v95
    %v97 = vpop.xlane.xlu0 %96
    %v98 = vsub.f32 %v88, %v94
    %v99 = vsub.f32 %v91, %v97
    %v100 = vmax.f32 %v98, 0.0
    %v101 = vmax.f32 %v99, 0.0
    %v102 = vadd.f32 %v66, %v74
    %v103 = vadd.f32 %v67, %v75
    %v104 = vsub.f32 0.0, %v66
    %v105 = vsub.f32 0.0, %v67
    %v106 = vmul.f32 %v104, 1.442695
    %v107 = vpow.pop %v106
    %v108 = vmul.f32 %v105, 1.442695
    %v109 = vpow.pop %v108
    %v110 = vadd.f32 %v100, %v107
    %v111 = vadd.f32 %v101, %v109
    %v112 = vsub.f32 0.0, %v74
    %v113 = vsub.f32 0.0, %v75
    %v114 = vmul.f32 %v112, 1.442695
    %v115 = vpow.pop %v114
    %v116 = vmul.f32 %v113, 1.442695
    %v117 = vpow.pop %v116
    %v118 = vadd.f32 %v94, %v115
    %v119 = vadd.f32 %v97, %v117
    %v120 = vmul.f32 %v110, %v118
    %v121 = vmul.f32 %v111, %v119
    %v122 = vlog2.pop %v120
    %v123 = vmul.f32 %v122, 0.6931472
    %v124 = vlog2.pop %v121
    %v125 = vmul.f32 %v124, 0.6931472
    %v126 = vadd.f32 %v102, %v123
    %v127 = vadd.f32 %v103, %v125
    %vm128 = vcmask 7168
    %129 = vst.msk [vmem:[%s2] sm:$0xff] %vm128, %v126
    %130 = vst.msk [vmem:[%s2 + $0x8] sm:$0xff] %vm128, %v127
    // Predicated region
    $region18: #{tpu_custom_call.1} parent=1 // pred_check
      _
    $region19: #{tpu_custom_call.1} parent=1 // pred_check_branch
      %132 = sbr.rel (0) target = $region21
    $region20: #{tpu_custom_call.1} parent=1 // pred_region
      _
    $region21: #{tpu_custom_call.1} parent=1 // pred_fallthru
      _
    // Predicated region
    $region22: #{tpu_custom_call.1} parent=1 // pred_check
      _
    $region23: #{tpu_custom_call.1} parent=1 // pred_check_branch
      %134 = sbr.rel (0) target = $region25
    $region24: #{tpu_custom_call.1} parent=1 // pred_region
      _
    $region25: #{tpu_custom_call.1} parent=1 // pred_fallthru
      _
    %135 = vsyncpa [#allocation3], 1
    %136 = vsyncpa [#allocation5], 1

</llo_original>
